<compile_context>
chip_gen: v6e
topology: v6e:2x2x1
jax: 0.10.0
libtpu: 0.0.40
codegen_flags: <defaults>
</compile_context>

<pallas_src>
import functools

import jax
import jax.numpy as jnp
from jax import lax
from jax.experimental import pallas as pl
from jax.experimental.pallas import tpu as pltpu

LANE_W = 128            # lane width of the flattened 2D view
MAX_BLOCK_ROWS = 2048   # 2048 * 128 * 4B = 1 MiB per f32 input block
NUM_CORES = 2           # parallel grid axis (v7x has 2 TCs; harmless on 1-TC chips)


def _huber_partial_kernel(pred_ref, targ_ref, out_ref, *, block_rows, valid_rows):
    """Accumulates per-core partial sums of elementwise Huber loss (delta=1.0).

    out_ref is an (8, LANE_W) f32 block resident across the reduction axis;
    the final cross-lane/sublane reduce happens once in the wrapper.
    """
    c = pl.program_id(0)          # "parallel" core axis
    j = pl.program_id(1)          # "arbitrary" reduction axis
    steps = pl.num_programs(1)

    @pl.when(j == 0)
    def _():
        out_ref[...] = jnp.zeros_like(out_ref)

    # Unclamped block index; the index_map clamps the DMA to stay in bounds,
    # here we mask out rows past the end of the data (tail of a partial block,
    # or a whole duplicated block when n_row_blocks isn't a multiple of
    # NUM_CORES).
    b = c * steps + j
    row0 = b * block_rows
    row_idx = row0 + lax.broadcasted_iota(jnp.int32, (block_rows, LANE_W), 0)
    mask = row_idx < valid_rows

    d = pred_ref[...].astype(jnp.float32) - targ_ref[...].astype(jnp.float32)
    ad = jnp.abs(d)
    delta = jnp.float32(1.0)  # inner huber_loss hard-codes delta=1.0 (see spec)
    loss = jnp.where(ad <= delta, 0.5 * d * d, delta * (ad - 0.5 * delta))
    loss = jnp.where(mask, loss, 0.0)

    if block_rows % 8 == 0:
        # Pure-VPU partial reduction: fold the block onto the (8, LANE_W)
        # accumulator with vreg-wise adds (no per-step cross-lane reduce).
        out_ref[...] += loss.reshape(block_rows // 8, 8, LANE_W).sum(axis=0)
    else:
        # Tiny-input fallback: whole array fits in one sub-8-row block.
        out_ref[0:1, :] += jnp.sum(loss, axis=0, keepdims=True)


def _huber_partial_sums(pred_2d, targ_2d):
    rows = pred_2d.shape[0]
    block_rows = min(MAX_BLOCK_ROWS, rows)
    n_row_blocks = pl.cdiv(rows, block_rows)
    steps_per_core = pl.cdiv(n_row_blocks, NUM_CORES)

    def in_index_map(c, j):
        blk = c * steps_per_core + j
        return (jnp.minimum(blk, n_row_blocks - 1), 0)   # clamp keeps DMA in bounds

    kernel = functools.partial(
        _huber_partial_kernel, block_rows=block_rows, valid_rows=rows)

    out = pl.pallas_call(
        kernel,
        out_shape=jax.ShapeDtypeStruct((NUM_CORES * 8, LANE_W), jnp.float32),
        grid_spec=pltpu.PrefetchScalarGridSpec(
            num_scalar_prefetch=0,
            grid=(NUM_CORES, steps_per_core),
            in_specs=[
                pl.BlockSpec((block_rows, LANE_W), in_index_map),
                pl.BlockSpec((block_rows, LANE_W), in_index_map),
            ],
            out_specs=pl.BlockSpec((8, LANE_W), lambda c, j: (c, 0)),
        ),
        compiler_params=pltpu.CompilerParams(
            dimension_semantics=("parallel", "arbitrary"),
        ),
    )(pred_2d, targ_2d)
    return out


def huber_loss_pallas(pred, target, loss_weight=1.0, reduction="mean", delta=1.0):
    """JAX/Pallas equivalent of HuberLoss.forward (weight=None path).

    pred, target: (N, C, H, W) arrays of matching shape/dtype (f32 or bf16).
    NOTE: like the PyTorch source, the elementwise delta is fixed to 1.0 (the
    `delta` arg is accepted for signature parity but ignored), and the result
    is always the mean-reduced scalar (the outer reduction of a scalar is a
    no-op for 'mean' / 'sum' / 'none' when weight is None).
    """
    if reduction not in ("none", "mean", "sum"):
        raise ValueError(f"Unsupported reduction mode: {reduction}")
    assert pred.shape == target.shape

    n_elem = pred.size
    flat_p = pred.reshape(-1)
    flat_t = target.reshape(-1)

    # Only pad when the element count is not a multiple of the lane width
    # (128).  Padding contributes exactly zero loss (both sides padded with 0,
    # so diff == 0) and the mean still divides by the true n_elem.
    rem = n_elem % LANE_W
    if rem:
        pad = LANE_W - rem
        flat_p = jnp.pad(flat_p, (0, pad))
        flat_t = jnp.pad(flat_t, (0, pad))

    p2 = flat_p.reshape(-1, LANE_W)
    t2 = flat_t.reshape(-1, LANE_W)

    partials = _huber_partial_sums(p2, t2)      # (NUM_CORES*8, 128) f32
    total = jnp.sum(partials)                   # single tiny final reduce
    mean_loss = total / jnp.float32(n_elem)     # F.huber_loss default: mean
    return jnp.float32(loss_weight) * mean_loss


def _reference(pred, target, loss_weight=1.0):
    d = pred.astype(jnp.float32) - target.astype(jnp.float32)
    ad = jnp.abs(d)
    loss = jnp.where(ad <= 1.0, 0.5 * d * d, ad - 0.5)
    return jnp.float32(loss_weight) * jnp.mean(loss)


if __name__ == "__main__":
    key = jax.random.PRNGKey(0)
    k1, k2 = jax.random.split(key)
    N, C, H, W = 2, 4, 16, 16  # layout: NCHW
    pred = jax.random.normal(k1, (N, C, H, W), dtype=jnp.float32)
    target = jax.random.normal(k2, (N, C, H, W), dtype=jnp.float32)

    out = huber_loss_pallas(pred, target, loss_weight=1.0, reduction="mean", delta=1.0)
    out = jax.block_until_ready(out)

    ref = _reference(pred, target)
    assert jnp.allclose(out, ref, rtol=1e-5, atol=1e-6), (out, ref)
    print("KERNEL_OK")
</pallas_src>

<mosaic_0001>
module attributes {stable_mosaic.version = 11 : i64} {
  func.func @_huber_partial_kernel(%arg0: i32, %arg1: i32, %arg2: memref<16x128xf32, #tpu.memory_space<vmem>>, %arg3: memref<16x128xf32, #tpu.memory_space<vmem>>, %arg4: memref<8x128xf32, #tpu.memory_space<vmem>>) attributes {dimension_semantics = [#tpu.dimension_semantics<parallel>, #tpu.dimension_semantics<arbitrary>], iteration_bounds = array<i64: 2, 1>, scalar_prefetch = 0 : i64, scratch_operands = 0 : i64, tpu.core_type = #tpu.core_type<tc>, window_params = [{transform_indices = @transform_0, window_bounds = array<i64: 16, 128>}, {transform_indices = @transform_1, window_bounds = array<i64: 16, 128>}, {transform_indices = @transform_2, window_bounds = array<i64: 8, 128>}]} {
    %c0_i32 = arith.constant 0 : i32
    %0 = arith.cmpi eq, %arg1, %c0_i32 : i32
    %1 = arith.extui %0 : i1 to i32
    %c0_i32_0 = arith.constant 0 : i32
    %2 = arith.cmpi ne, %1, %c0_i32_0 : i32
    scf.if %2 {
      %cst_15 = arith.constant 0.000000e+00 : f32
      %33 = vector.broadcast %cst_15 : f32 to vector<8x128xf32>
      %c0_16 = arith.constant 0 : index
      %c0_17 = arith.constant 0 : index
      %34 = vector.load %arg4[%c0_16, %c0_17] : memref<8x128xf32, #tpu.memory_space<vmem>>, vector<8x128xf32>
      tpu.vector_store %arg4[%c0_16, %c0_17], %33 {strides = array<i32>} : memref<8x128xf32, #tpu.memory_space<vmem>>, vector<8x128xf32>,
    } else {
    }
    %c1_i32 = arith.constant 1 : i32
    %3 = arith.muli %arg0, %c1_i32 : i32
    %4 = arith.addi %3, %arg1 : i32
    %c16_i32 = arith.constant 16 : i32
    %5 = arith.muli %4, %c16_i32 : i32
    %6 = tpu.iota {dimensions = array<i32: 0>} : vector<16x128xi32>
    %7 = vector.broadcast %5 : i32 to vector<16x128xi32>
    %8 = arith.addi %7, %6 : vector<16x128xi32>
    %c16_i32_1 = arith.constant 16 : i32
    %9 = vector.broadcast %c16_i32_1 : i32 to vector<16x128xi32>
    %10 = arith.cmpi slt, %8, %9 : vector<16x128xi32>
    %c0 = arith.constant 0 : index
    %c0_2 = arith.constant 0 : index
    %11 = vector.load %arg2[%c0, %c0_2] : memref<16x128xf32, #tpu.memory_space<vmem>>, vector<16x128xf32>
    %c0_3 = arith.constant 0 : index
    %c0_4 = arith.constant 0 : index
    %12 = vector.load %arg3[%c0_3, %c0_4] : memref<16x128xf32, #tpu.memory_space<vmem>>, vector<16x128xf32>
    %13 = arith.subf %11, %12 : vector<16x128xf32>
    %14 = math.absf %13 : vector<16x128xf32>
    %cst = arith.constant 1.000000e+00 : f32
    %15 = vector.broadcast %cst : f32 to vector<16x128xf32>
    %16 = arith.cmpf ole, %14, %15 : vector<16x128xf32>
    %cst_5 = arith.constant 5.000000e-01 : f32
    %17 = vector.broadcast %cst_5 : f32 to vector<16x128xf32>
    %18 = arith.mulf %17, %13 : vector<16x128xf32>
    %19 = arith.mulf %18, %13 : vector<16x128xf32>
    %cst_6 = arith.constant 5.000000e-01 : f32
    %cst_7 = arith.constant 1.000000e+00 : f32
    %20 = arith.mulf %cst_6, %cst_7 : f32
    %21 = vector.broadcast %20 : f32 to vector<16x128xf32>
    %22 = arith.subf %14, %21 : vector<16x128xf32>
    %cst_8 = arith.constant 1.000000e+00 : f32
    %23 = vector.broadcast %cst_8 : f32 to vector<16x128xf32>
    %24 = arith.mulf %23, %22 : vector<16x128xf32>
    %25 = arith.select %16, %19, %24 : vector<16x128xi1>, vector<16x128xf32>
    %cst_9 = arith.constant 0.000000e+00 : f32
    %26 = vector.broadcast %cst_9 : f32 to vector<16x128xf32>
    %27 = arith.select %10, %25, %26 : vector<16x128xi1>, vector<16x128xf32>
    %c0_10 = arith.constant 0 : index
    %c0_11 = arith.constant 0 : index
    %28 = vector.load %arg4[%c0_10, %c0_11] : memref<8x128xf32, #tpu.memory_space<vmem>>, vector<8x128xf32>
    %29 = vector.shape_cast %27 : vector<16x128xf32> to vector<2x8x128xf32>
    %cst_12 = arith.constant dense<0.000000e+00> : vector<8x128xf32>
    %30 = vector.multi_reduction <add>, %29, %cst_12 [0] : vector<2x8x128xf32> to vector<8x128xf32>
    %31 = arith.addf %28, %30 : vector<8x128xf32>
    %c0_13 = arith.constant 0 : index
    %c0_14 = arith.constant 0 : index
    %32 = vector.load %arg4[%c0_13, %c0_14] : memref<8x128xf32, #tpu.memory_space<vmem>>, vector<8x128xf32>
    tpu.vector_store %arg4[%c0_13, %c0_14], %31 {strides = array<i32>} : memref<8x128xf32, #tpu.memory_space<vmem>>, vector<8x128xf32>,
    return
  }
  func.func @transform_0(%arg0: i32, %arg1: i32) -> (i32, i32) {
    %c1_i32 = arith.constant 1 : i32
    %0 = arith.muli %arg0, %c1_i32 : i32
    %1 = arith.addi %0, %arg1 : i32
    %c0_i32 = arith.constant 0 : i32
    %2 = arith.minsi %1, %c0_i32 : i32
    %c0_i32_0 = arith.constant 0 : i32
    %c0_i32_1 = arith.constant 0 : i32
    return %2, %c0_i32_0 : i32, i32
  }
  func.func @transform_1(%arg0: i32, %arg1: i32) -> (i32, i32) {
    %c1_i32 = arith.constant 1 : i32
    %0 = arith.muli %arg0, %c1_i32 : i32
    %1 = arith.addi %0, %arg1 : i32
    %c0_i32 = arith.constant 0 : i32
    %2 = arith.minsi %1, %c0_i32 : i32
    %c0_i32_0 = arith.constant 0 : i32
    %c0_i32_1 = arith.constant 0 : i32
    return %2, %c0_i32_0 : i32, i32
  }
  func.func @transform_2(%arg0: i32, %arg1: i32) -> (i32, i32) {
    %c0_i32 = arith.constant 0 : i32
    %c0_i32_0 = arith.constant 0 : i32
    return %arg0, %c0_i32 : i32, i32
  }
}

</mosaic_0001>

<llo_original>
// kernel: tpu_custom_call.1
$region0: #{tpu_custom_call.1}
  #allocation0 [shape = 'u32[]', space=smem, size = 0x4, offset = 0x4, fixed_abs, tag = 'smem constant byte address 0x4 - core index']
  #allocation1 [shape = 'u32[144,128]{1,0:T(1,128)}', space=vmem, size = 0x12000, scoped, tag = 'internal scratch']
  %s0 = inlined_call_operand.hbm [shape: f32[16,128], index: 0, kind: input, shape index: {}]
  %s1 = inlined_call_operand.hbm [shape: f32[16,128], index: 1, kind: input, shape index: {}]
  %s2 = inlined_call_operand.hbm [shape: f32[16,128], index: 2, kind: output, shape index: {}]
  %s3 = sld [smem:[#allocation0]]
  $region53: #{tpu_custom_call.1} parent=0
    _
  %s5 = ssub.s32 1, %s3
  %s6 = scalar_select 0, %s5, %s3
  $region1: #{tpu_custom_call.1} parent=0
    #allocation2 [shape = 'u8[16384]{0}', space=vmem, size = 0x4000, scoped, tag = 'input window, operand 0']
    #allocation3 [shape = 's32[2]{0}', space=sflag, size = 0x8, scoped, tag = 'scoped memory for tpu_custom_call.1']
    #allocation4 [shape = 's32[2]{0}', space=sflag, size = 0x8, scoped, tag = 'scoped memory for tpu_custom_call.1']
    #allocation5 [shape = 'u8[16384]{0}', space=vmem, size = 0x4000, scoped, tag = 'input window, operand 1']
    #allocation6 [shape = 's32[2]{0}', space=sflag, size = 0x8, scoped, tag = 'scoped memory for tpu_custom_call.1']
    #allocation7 [shape = 'u8[8192]{0}', space=vmem, size = 0x2000, scoped, tag = 'output window, operand 0']
    %7 = vsyncpa [#allocation3], 0
    %s8 = scalar_lea.sflag [#allocation3], 1
    %9 = vsyncpa %s8, 0
    %10 = vsyncpa [#allocation6], 0
    %s11 = scalar_lea.sflag [#allocation6], 1
    %12 = vsyncpa %s11, 0
    %13 = vsyncpa [#allocation4], 0
    %s14 = scalar_lea.sflag [#allocation4], 1
    %15 = vsyncpa %s14, 0
    loop: start=0, step=1, limit=4
    $region2: #{tpu_custom_call.1} parent=1 // loop_pre_header
      _
    $region3: #{tpu_custom_call.1} parent=1 // loop_header
      %s17 = sphi 0, %s21
      %p18 = scmp.ge.s32.totalorder %s17, 4
      %s24 = sphi 0, %s36
      %s25 = sphi 0, %s32
      %s26 = sphi 0, %s24
      %s27 = sphi 0, %s25
      %s28 = sphi 0, %s26
      %s29 = sphi 0, %s27
      %s45 = sphi 0, %s47
      %s48 = sphi 0, %s45
      %s49 = sphi 0, %s48
      %s65 = sphi 0, %s49
      %s77 = sphi 0, %s79
      %s80 = sphi 0, %s77
      %s81 = sphi 0, %s80
      %s97 = sphi 0, %s81
      %s103 = sphi 0, %s105
      %s106 = sphi 0, %s103
      %s107 = sphi 0, %s106
      %s123 = sphi 0, %s107
    $region4: #{tpu_custom_call.1} parent=1 // loop_header_branch
      %20 = sbr.rel (%p18) target = $region8
    $region5: #{tpu_custom_call.1} parent=1 // loop_body
      %s22 = ssub.s32 %s17, 1
      %s23 = ssub.s32 %s17, 2
      %s30 = sadd.s32 1, %s25
      %p31 = scmp.ge.s32.totalorder %s30, 1
      %s32 = scalar_select %p31, 0, %s30
      %s33 = sadd.s32 1, %s24
      %s34 = scalar_select %p31, %s33, %s24
      %p35 = scmp.ge.s32.totalorder %s34, 2
      %s36 = scalar_select %p35, 0, %s34
      %s37 = sadd.s32 %s24, %s25
      %p38 = scmp.lt.s32.totalorder %s37, 0
      %s39 = scalar_select %p38, %s37, 0
      %s40 = sadd.s32 %s36, %s32
      %p41 = scmp.lt.s32.totalorder %s40, 0
      %s42 = scalar_select %p41, %s40, 0
      %s43 = ssub.s32 %s39, %s42
      %p44 = scmp.eq.s32.totalorder %s43, 0
      %s46 = sadd.s32 %s45, 1
      %s47 = scalar_select %p44, %s45, %s46
      %p50 = pneg %p44
      %p51 = scmp.eq.s32.totalorder %s17, 1
      %p52 = por %p50, %p51
      %p53 = scmp.ne.s32.totalorder %s45, %s48
      %p54 = scmp.eq.s32.totalorder %s17, 0
      %p55 = por %p53, %p54
      %p56 = scmp.ne.s32.totalorder %s45, %s48
      %p57 = scmp.eq.s32.totalorder %s22, 1
      %p58 = por %p56, %p57
      %p59 = scmp.ne.s32.totalorder %s48, %s49
      %p60 = scmp.eq.s32.totalorder %s22, 0
      %p61 = por %p59, %p60
      %p62 = scmp.ne.s32.totalorder %s48, %s49
      %p63 = scmp.eq.s32.totalorder %s23, 1
      %p64 = por %p62, %p63
      %p66 = scmp.ne.s32.totalorder %s49, %s65
      %p67 = scmp.eq.s32.totalorder %s23, 0
      %p68 = por %p66, %p67
      %s69 = sadd.s32 %s24, %s25
      %p70 = scmp.lt.s32.totalorder %s69, 0
      %s71 = scalar_select %p70, %s69, 0
      %s72 = sadd.s32 %s36, %s32
      %p73 = scmp.lt.s32.totalorder %s72, 0
      %s74 = scalar_select %p73, %s72, 0
      %s75 = ssub.s32 %s71, %s74
      %p76 = scmp.eq.s32.totalorder %s75, 0
      %s78 = sadd.s32 %s77, 1
      %s79 = scalar_select %p76, %s77, %s78
      %p82 = pneg %p76
      %p83 = scmp.eq.s32.totalorder %s17, 1
      %p84 = por %p82, %p83
      %p85 = scmp.ne.s32.totalorder %s77, %s80
      %p86 = scmp.eq.s32.totalorder %s17, 0
      %p87 = por %p85, %p86
      %p88 = scmp.ne.s32.totalorder %s77, %s80
      %p89 = scmp.eq.s32.totalorder %s22, 1
      %p90 = por %p88, %p89
      %p91 = scmp.ne.s32.totalorder %s80, %s81
      %p92 = scmp.eq.s32.totalorder %s22, 0
      %p93 = por %p91, %p92
      %p94 = scmp.ne.s32.totalorder %s80, %s81
      %p95 = scmp.eq.s32.totalorder %s23, 1
      %p96 = por %p94, %p95
      %p98 = scmp.ne.s32.totalorder %s81, %s97
      %p99 = scmp.eq.s32.totalorder %s23, 0
      %p100 = por %p98, %p99
      %s101 = ssub.s32 %s24, %s36
      %p102 = scmp.eq.s32.totalorder %s101, 0
      %s104 = sadd.s32 %s103, 1
      %s105 = scalar_select %p102, %s103, %s104
      %p108 = pneg %p102
      %p109 = scmp.eq.s32.totalorder %s17, 1
      %p110 = por %p108, %p109
      %p111 = scmp.ne.s32.totalorder %s103, %s106
      %p112 = scmp.eq.s32.totalorder %s17, 0
      %p113 = por %p111, %p112
      %p114 = scmp.ne.s32.totalorder %s103, %s106
      %p115 = scmp.eq.s32.totalorder %s22, 1
      %p116 = por %p114, %p115
      %p117 = scmp.ne.s32.totalorder %s106, %s107
      %p118 = scmp.eq.s32.totalorder %s22, 0
      %p119 = por %p117, %p118
      %p120 = scmp.ne.s32.totalorder %s106, %s107
      %p121 = scmp.eq.s32.totalorder %s23, 1
      %p122 = por %p120, %p121
      %p124 = scmp.ne.s32.totalorder %s107, %s123
      %p125 = scmp.eq.s32.totalorder %s23, 0
      %p126 = por %p124, %p125
      %p127 = scmp.le.s32.totalorder 1, %s17
      %p128 = scmp.lt.s32.totalorder %s17, 3
      %p129 = pnand %p127, %p128
      %p130 = pneg %p129
      // Predicated region
      $region9: #{tpu_custom_call.1} parent=5 // pred_check
        _
      $region10: #{tpu_custom_call.1} parent=5 // pred_check_branch
        %132 = sbr.rel (%p129) target = $region12
      $region11: #{tpu_custom_call.1} parent=5 // pred_region
        %s133 = ssub.s32 %s17, 1
      $region12: #{tpu_custom_call.1} parent=5 // pred_fallthru
        _
      %p134 = scmp.lt.s32.totalorder %s17, 2
      // Predicated region
      $region13: #{tpu_custom_call.1} parent=5 // pred_check
        %p135 = pneg %p134
      $region14: #{tpu_custom_call.1} parent=5 // pred_check_branch
        %137 = sbr.rel (%p135) target = $region16
      $region15: #{tpu_custom_call.1} parent=5 // pred_region
        // Predicated region
        $region17: #{tpu_custom_call.1} parent=15 // pred_check
          %p138 = pneg %p55
        $region18: #{tpu_custom_call.1} parent=15 // pred_check_branch
          %140 = sbr.rel (%p138) target = $region20
        $region19: #{tpu_custom_call.1} parent=15 // pred_region
          %s141 = sand.u32 %s45, 1
          %s142 = scalar_lea.sflag [#allocation3], %s141
          %s143 = sand.u32 %s45, 1
          %s144 = smul.addr %s143, 16
          %s145 = scalar_lea.vmem [#allocation2], %s144
          %s146 = sadd.s32 %s24, %s25
          %p147 = scmp.lt.s32.totalorder %s146, 0
          %s148 = scalar_select %p147, %s146, 0
          %s149 = smul.u32 2, %s148
          %s151 = ssub.s32 256, 256
          %152 = vsyncadd %s142, %s151
          %s153 = smul.addr %s149, 128
          %s154 = scalar_lea.hbm %s0, %s153
          %s155 = sshll.u32 %s145, 4
          %s156 = int_to_ptr.vmem [resolvable:$true] %s155
          %161 = dma.hbm_to_vmem [thread:$0]  %s154, 256, %s156, %s142, 128, 128, 8
        $region20: #{tpu_custom_call.1} parent=15 // pred_fallthru
          _
        // Predicated region
        $region21: #{tpu_custom_call.1} parent=15 // pred_check
          %p162 = pneg %p87
        $region22: #{tpu_custom_call.1} parent=15 // pred_check_branch
          %164 = sbr.rel (%p162) target = $region24
        $region23: #{tpu_custom_call.1} parent=15 // pred_region
          %s165 = sand.u32 %s77, 1
          %s166 = scalar_lea.sflag [#allocation6], %s165
          %s167 = sand.u32 %s77, 1
          %s168 = smul.addr %s167, 16
          %s169 = scalar_lea.vmem [#allocation5], %s168
          %s170 = sadd.s32 %s24, %s25
          %p171 = scmp.lt.s32.totalorder %s170, 0
          %s172 = scalar_select %p171, %s170, 0
          %s173 = smul.u32 2, %s172
          %s175 = ssub.s32 256, 256
          %176 = vsyncadd %s166, %s175
          %s177 = smul.addr %s173, 128
          %s178 = scalar_lea.hbm %s1, %s177
          %s179 = sshll.u32 %s169, 4
          %s180 = int_to_ptr.vmem [resolvable:$true] %s179
          %185 = dma.hbm_to_vmem [thread:$0]  %s178, 256, %s180, %s166, 128, 128, 8
        $region24: #{tpu_custom_call.1} parent=15 // pred_fallthru
          _
      $region16: #{tpu_custom_call.1} parent=5 // pred_fallthru
        _
      %p186 = scmp.le.s32.totalorder 1, %s17
      %p187 = scmp.lt.s32.totalorder %s17, 3
      %p188 = pnand %p186, %p187
      %p189 = pneg %p188
      // Predicated region
      $region25: #{tpu_custom_call.1} parent=5 // pred_check
        _
      $region26: #{tpu_custom_call.1} parent=5 // pred_check_branch
        %191 = sbr.rel (%p188) target = $region28
      $region27: #{tpu_custom_call.1} parent=5 // pred_region
        %s192 = ssub.s32 %s17, 1
        %s193 = sand.u32 %s48, 1
        %s194 = scalar_lea.sflag [#allocation3], %s193
        %s195 = sand.u32 %s48, 1
        %s196 = smul.addr %s195, 16
        %s197 = scalar_lea.vmem [#allocation2], %s196
        // Predicated region
        $region29: #{tpu_custom_call.1} parent=27 // pred_check
          %p198 = pneg %p61
        $region30: #{tpu_custom_call.1} parent=27 // pred_check_branch
          %200 = sbr.rel (%p198) target = $region32
        $region31: #{tpu_custom_call.1} parent=27 // pred_region
          %201 = dma.done %s194, 256
        $region32: #{tpu_custom_call.1} parent=27 // pred_fallthru
          _
        %s202 = sand.u32 %s80, 1
        %s203 = scalar_lea.sflag [#allocation6], %s202
        %s204 = sand.u32 %s80, 1
        %s205 = smul.addr %s204, 16
        %s206 = scalar_lea.vmem [#allocation5], %s205
        // Predicated region
        $region33: #{tpu_custom_call.1} parent=27 // pred_check
          %p207 = pneg %p93
        $region34: #{tpu_custom_call.1} parent=27 // pred_check_branch
          %209 = sbr.rel (%p207) target = $region36
        $region35: #{tpu_custom_call.1} parent=27 // pred_region
          %210 = dma.done %s203, 256
        $region36: #{tpu_custom_call.1} parent=27 // pred_fallthru
          _
        %s211 = sand.u32 %s48, 1
        %s212 = scalar_lea.sflag [#allocation3], %s211
        %s213 = sand.u32 %s48, 1
        %s214 = smul.addr %s213, 16
        %s215 = scalar_lea.vmem [#allocation2], %s214
        %p216 = pneg %p61
        %p217 = pneg %p58
        %s218 = sand.u32 %s80, 1
        %s219 = scalar_lea.sflag [#allocation6], %s218
        %s220 = sand.u32 %s80, 1
        %s221 = smul.addr %s220, 16
        %s222 = scalar_lea.vmem [#allocation5], %s221
        %p223 = pneg %p93
        %p224 = pneg %p90
        %p225 = pneg %p119
        %p226 = pneg %p116
        %s227 = sand.u32 %s106, 1
        %s228 = scalar_lea.sflag [#allocation4], %s227
        %s229 = sand.u32 %s106, 1
        %s230 = smul.addr %s229, 8
        %s231 = scalar_lea.vmem [#allocation7], %s230
        %s232 = sadd.s32 %s26, %s27
        %p233 = scmp.lt.s32.totalorder %s232, 0
        %s234 = scalar_select %p233, %s232, 0
        %s235 = smul.u32 2, %s234
        %s236 = sadd.s32 %s26, %s27
        %p237 = scmp.lt.s32.totalorder %s236, 0
        %s238 = scalar_select %p237, %s236, 0
        %s239 = smul.u32 2, %s238
        %p240 = scmp.eq.s32.totalorder %s27, 0
        // Predicated region
        $region37: #{tpu_custom_call.1} parent=27 // pred_check
          %p241 = pneg %p240
        $region38: #{tpu_custom_call.1} parent=27 // pred_check_branch
          %243 = sbr.rel (%p241) target = $region40
        $region39: #{tpu_custom_call.1} parent=27 // pred_region
          %244 = vst [vmem:[%s231] sm:$0xff] 0.0
        $region40: #{tpu_custom_call.1} parent=27 // pred_fallthru
          _
        %s245 = sadd.s32 %s26, %s27
        %s246 = smul.u32 %s245, 16
        %v247 = vlaneseq
        %v248 = vshrl.u32 %v247, 7
        %v249 = vadd.s32 %v248, 8
        %v250 = vstv %s246
        %v251 = vadd.s32 %v250, %v248
        %v252 = vadd.s32 %v250, %v249
        %vm253 = vcmp.lt.s32.totalorder %v251, 16
        %vm254 = vcmp.lt.s32.totalorder %v252, 16
        %v255 = vld [vmem:[%s197] sm:$0xff]
        %v256 = vld [vmem:[%s197 + $0x8] sm:$0xff]
        %v257 = vld [vmem:[%s206] sm:$0xff]
        %v258 = vld [vmem:[%s206 + $0x8] sm:$0xff]
        %v259 = vsub.f32 %v255, %v257
        %v260 = vsub.f32 %v256, %v258
        %v261 = vand.u32 2147483647, %v259
        %v262 = vand.u32 2147483647, %v260
        %vm263 = vcmp.le.f32.partialorder %v261, 1.0
        %vm264 = vcmp.le.f32.partialorder %v262, 1.0
        %v265 = vmul.f32 %v259, 0.5
        %v266 = vmul.f32 %v260, 0.5
        %v267 = vmul.f32 %v265, %v259
        %v268 = vmul.f32 %v266, %v260
        %v269 = vsub.f32 %v261, 0.5
        %v270 = vsub.f32 %v262, 0.5
        %v271 = vsel %vm263, %v267, %v269
        %v272 = vsel %vm264, %v268, %v270
        %v273 = vsel %vm253, %v271, 0.0
        %v274 = vsel %vm254, %v272, 0.0
        %v275 = vld [vmem:[%s231] sm:$0xff]
        %v276 = vadd.f32 %v273, %v274
        %v277 = vadd.f32 %v275, %v276
        %278 = vst [vmem:[%s231] sm:$0xff] %v277
        %s279 = sand.u32 %s106, 1
        %s280 = scalar_lea.sflag [#allocation4], %s279
        %s281 = sand.u32 %s106, 1
        %s282 = smul.addr %s281, 8
        %s283 = scalar_lea.vmem [#allocation7], %s282
        // Predicated region
        $region41: #{tpu_custom_call.1} parent=27 // pred_check
          %p284 = pneg %p116
        $region42: #{tpu_custom_call.1} parent=27 // pred_check_branch
          %286 = sbr.rel (%p284) target = $region44
        $region43: #{tpu_custom_call.1} parent=27 // pred_region
          %s288 = ssub.s32 128, 128
          %289 = vsyncadd %s280, %s288
          %s290 = smul.addr %s26, 128
          %s291 = scalar_lea.hbm %s2, %s290
          %s293 = sshll.u32 %s283, 4
          %s294 = int_to_ptr.vmem [resolvable:$true] %s293
          %296 = dma.vmem_to_hbm [thread:$0]  %s294, 128, %s291, %s280
        $region44: #{tpu_custom_call.1} parent=27 // pred_fallthru
          _
      $region28: #{tpu_custom_call.1} parent=5 // pred_fallthru
        _
      %p297 = scmp.le.s32.totalorder 2, %s17
      // Predicated region
      $region45: #{tpu_custom_call.1} parent=5 // pred_check
        %p298 = pneg %p297
      $region46: #{tpu_custom_call.1} parent=5 // pred_check_branch
        %300 = sbr.rel (%p298) target = $region48
      $region47: #{tpu_custom_call.1} parent=5 // pred_region
        %s301 = ssub.s32 %s17, 2
        // Predicated region
        $region49: #{tpu_custom_call.1} parent=47 // pred_check
          %p302 = pneg %p122
        $region50: #{tpu_custom_call.1} parent=47 // pred_check_branch
          %304 = sbr.rel (%p302) target = $region52
        $region51: #{tpu_custom_call.1} parent=47 // pred_region
          %s305 = sand.u32 %s107, 1
          %s306 = scalar_lea.sflag [#allocation4], %s305
          %s307 = sand.u32 %s107, 1
          %s308 = smul.addr %s307, 8
          %s309 = scalar_lea.vmem [#allocation7], %s308
          %310 = dma.done %s306, 128
        $region52: #{tpu_custom_call.1} parent=47 // pred_fallthru
          _
      $region48: #{tpu_custom_call.1} parent=5 // pred_fallthru
        _
    $region6: #{tpu_custom_call.1} parent=1 // loop_footer
      %s21 = sadd.s32 1, %s17
    $region7: #{tpu_custom_call.1} parent=1 // loop_footer_branch
      %16 = sbr.rel target = $region3
    $region8: #{tpu_custom_call.1} parent=1 // loop_exit
      _
    %311 = vsyncpa [#allocation3], 1
    %s312 = scalar_lea.sflag [#allocation3], 1
    %313 = vsyncpa %s312, 1
    %314 = vsyncpa [#allocation6], 1
    %s315 = scalar_lea.sflag [#allocation6], 1
    %316 = vsyncpa %s315, 1
    %317 = vsyncpa [#allocation4], 1
    %s318 = scalar_lea.sflag [#allocation4], 1
    %319 = vsyncpa %s318, 1

</llo_original>
